<compile_context>
chip_gen: v5e
topology: v5e:2x2
jax: 0.10.0
libtpu: 0.0.40
codegen_flags: <defaults>
</compile_context>

<pallas_src>
import functools

import jax
import jax.numpy as jnp
from jax.experimental import pallas as pl
from jax.experimental.pallas import tpu as pltpu

_LANE = 128


def _layernorm_kernel(x_ref, w_ref, b_ref, o_ref, *, eps, features):
    """x_ref/o_ref: (TR, Hpad) row tile.  w_ref/b_ref: (1, Hpad), VMEM resident.

    `features` is the TRUE hidden size; padded lanes hold zeros and therefore
    do not perturb the sums below.
    """
    x = x_ref[...].astype(jnp.float32)
    w = w_ref[...].astype(jnp.float32)
    b = b_ref[...].astype(jnp.float32)

    # One fused pass: both reductions come from a single read of the tile.
    s1 = jnp.sum(x, axis=-1, keepdims=True)        # (TR, 1)
    s2 = jnp.sum(x * x, axis=-1, keepdims=True)    # (TR, 1)

    mean = s1 * (1.0 / features)
    # Unbiased variance via E[x^2] - E[x]^2, f32 accumulation.  features == 1
    # yields 0 * inf = NaN, matching torch.std's behaviour.
    inv_nm1 = (1.0 / (features - 1)) if features > 1 else float("inf")
    var = (s2 - s1 * mean) * inv_nm1
    var = jnp.maximum(var, 0.0)                    # guard tiny negative cancellation
    std = jnp.sqrt(var)

    # Per-row reciprocal (only TR values per tile).  approx=True would move it
    # to the EUP slot but its ~2^-12 relative error can break 1e-5 checks.
    inv = pl.reciprocal(std + eps, approx=False)   # (TR, 1)

    o_ref[...] = ((x - mean) * inv * w + b).astype(o_ref.dtype)


def _sublane_rows(dtype):
    """Sublane packing for the dtype: 8 rows f32, 16 bf16, 32 int8/fp8."""
    itemsize = jnp.dtype(dtype).itemsize
    return 8 * max(1, 4 // max(1, itemsize))


def _vmem_capacity_bytes():
    """Physical VMEM of the current chip; fall back to the most constrained
    generation (v7x: 64 MiB per TensorCore) if the query is unavailable."""
    try:
        cap = int(pltpu.get_tpu_info().vmem_capacity_bytes)
        if cap > 0:
            return cap
    except Exception:
        pass
    return 64 * 1024 * 1024


def _pick_row_tile(rows, row_bytes, sublane, target_tile_bytes, min_steps=8):
    """Largest sublane-aligned row tile that (a) stays near target_tile_bytes
    and (b) leaves >= min_steps grid steps when `rows` is large enough, so the
    DMA pipeline fills and both v7x TensorCores get work."""
    tr = max(sublane, target_tile_bytes // max(1, row_bytes))
    tr = min(tr, max(sublane, rows // min_steps))
    tr = max(sublane, (tr // sublane) * sublane)
    if tr >= rows:
        return rows            # full-extent block is always a legal block shape
    return tr


def layer_norm(x, weight, bias, eps=1e-6):
    """x: (..., H); weight, bias: (H,). Returns same shape/dtype as x."""
    orig_shape = x.shape
    features = orig_shape[-1]
    rows = 1
    for d in orig_shape[:-1]:
        rows *= d

    x2d = x.reshape(rows, features)
    w2d = weight.reshape(1, features)
    b2d = bias.reshape(1, features)

    # Lane-dense layout: pad hidden to a multiple of 128 lanes.  Zero padding
    # leaves the sums (and hence mean/std) unchanged; padded output lanes are
    # exactly zero (w = b = 0 there) and are sliced off below.
    h_pad = ((features + _LANE - 1) // _LANE) * _LANE
    if h_pad != features:
        x2d = jnp.pad(x2d, ((0, 0), (0, h_pad - features)))
        w2d = jnp.pad(w2d, ((0, 0), (0, h_pad - features)))
        b2d = jnp.pad(b2d, ((0, 0), (0, h_pad - features)))

    dtype_bytes = jnp.dtype(x.dtype).itemsize
    sublane = _sublane_rows(x.dtype)

    # Per-generation sizing: 128 MiB VMEM (v5e/v6e) -> 64 MiB scoped limit and
    # ~8 MiB tiles; 64 MiB VMEM (v7x) -> 32 MiB limit and ~4 MiB tiles.  The
    # pipeline holds 2 input + 2 output tile buffers plus f32 intermediates,
    # so /8 leaves comfortable headroom.
    vmem_cap = _vmem_capacity_bytes()
    vmem_limit = min(vmem_cap // 2, 64 * 1024 * 1024)
    target_tile_bytes = vmem_limit // 8

    tr = _pick_row_tile(rows, h_pad * dtype_bytes, sublane, target_tile_bytes)
    grid = (pl.cdiv(rows, tr),)

    kernel = functools.partial(_layernorm_kernel, eps=eps, features=features)

    param_bytes = jnp.dtype(weight.dtype).itemsize
    cost = pl.CostEstimate(
        flops=7 * rows * h_pad,
        transcendentals=2 * rows,                  # sqrt + reciprocal per row
        bytes_accessed=2 * rows * h_pad * dtype_bytes + 2 * h_pad * param_bytes,
    )

    out2d = pl.pallas_call(
        kernel,
        out_shape=jax.ShapeDtypeStruct((rows, h_pad), x.dtype),
        grid_spec=pltpu.PrefetchScalarGridSpec(
            num_scalar_prefetch=0,
            grid=grid,
            in_specs=[
                # Row tile of x; Pallas double-buffers the HBM<->VMEM DMAs.
                # TODO(synk): on v7x, sweep pipeline_mode=pl.Buffered(3) here
                # if a profile shows exposed DMA at short step times.
                pl.BlockSpec((tr, h_pad), lambda i: (i, 0)),
                # weight/bias stay resident (same block every grid step).
                pl.BlockSpec((1, h_pad), lambda i: (0, 0)),
                pl.BlockSpec((1, h_pad), lambda i: (0, 0)),
            ],
            out_specs=pl.BlockSpec((tr, h_pad), lambda i: (i, 0)),
        ),
        compiler_params=pltpu.CompilerParams(
            # Row tiles are fully independent -> shard the grid across
            # TensorCores (2 TCs on v7x).
            dimension_semantics=("parallel",),
            vmem_limit_bytes=vmem_limit,
        ),
        cost_estimate=cost,
    )(x2d, w2d, b2d)

    if h_pad != features:
        out2d = out2d[:, :features]
    return out2d.reshape(orig_shape)


if __name__ == "__main__":
    key = jax.random.PRNGKey(0)

    batch, seq, hidden = 2, 8, 32
    x = jax.random.normal(key, (batch, seq, hidden), dtype=jnp.float32)

    # Deterministic param init, matching nn.Parameter(torch.ones/zeros(features)).
    weight = jnp.ones((hidden,), dtype=jnp.float32)
    bias = jnp.zeros((hidden,), dtype=jnp.float32)

    out = layer_norm(x, weight, bias, eps=1e-6)
    out = jax.block_until_ready(out)

    # Reference check in plain JAX (same unbiased-std + eps-on-std semantics).
    mean = jnp.mean(x, axis=-1, keepdims=True)
    std = jnp.std(x, axis=-1, keepdims=True, ddof=1)
    ref = weight * (x - mean) / (std + 1e-6) + bias
    assert out.shape == x.shape
    assert jnp.allclose(out, ref, atol=1e-5, rtol=1e-5), "mismatch vs reference"

    print("KERNEL_OK")
</pallas_src>

<mosaic_0001>
module attributes {stable_mosaic.version = 11 : i64} {
  func.func @_layernorm_kernel(%arg0: i32, %arg1: memref<8x128xf32, #tpu.memory_space<vmem>>, %arg2: memref<1x128xf32, #tpu.memory_space<vmem>>, %arg3: memref<1x128xf32, #tpu.memory_space<vmem>>, %arg4: memref<8x128xf32, #tpu.memory_space<vmem>>) attributes {dimension_semantics = [#tpu.dimension_semantics<parallel>], iteration_bounds = array<i64: 2>, scalar_prefetch = 0 : i64, scratch_operands = 0 : i64, tpu.core_type = #tpu.core_type<tc>, window_params = [{transform_indices = @transform_0, window_bounds = array<i64: 8, 128>}, {pipeline_mode = #tpu.pipeline_mode<synchronous>, transform_indices = @transform_1, window_bounds = array<i64: 1, 128>}, {pipeline_mode = #tpu.pipeline_mode<synchronous>, transform_indices = @transform_2, window_bounds = array<i64: 1, 128>}, {transform_indices = @transform_3, window_bounds = array<i64: 8, 128>}]} {
    %c0 = arith.constant 0 : index
    %c0_0 = arith.constant 0 : index
    %0 = vector.load %arg1[%c0, %c0_0] : memref<8x128xf32, #tpu.memory_space<vmem>>, vector<8x128xf32>
    %c0_1 = arith.constant 0 : index
    %c0_2 = arith.constant 0 : index
    %1 = vector.load %arg2[%c0_1, %c0_2] : memref<1x128xf32, #tpu.memory_space<vmem>>, vector<1x128xf32>
    %c0_3 = arith.constant 0 : index
    %c0_4 = arith.constant 0 : index
    %2 = vector.load %arg3[%c0_3, %c0_4] : memref<1x128xf32, #tpu.memory_space<vmem>>, vector<1x128xf32>
    %cst = arith.constant dense<0.000000e+00> : vector<8xf32>
    %3 = vector.multi_reduction <add>, %0, %cst [1] : vector<8x128xf32> to vector<8xf32>
    %4 = vector.shape_cast %3 : vector<8xf32> to vector<8x1xf32>
    %5 = arith.mulf %0, %0 : vector<8x128xf32>
    %cst_5 = arith.constant dense<0.000000e+00> : vector<8xf32>
    %6 = vector.multi_reduction <add>, %5, %cst_5 [1] : vector<8x128xf32> to vector<8xf32>
    %7 = vector.shape_cast %6 : vector<8xf32> to vector<8x1xf32>
    %cst_6 = arith.constant 3.125000e-02 : f32
    %8 = vector.broadcast %cst_6 : f32 to vector<8x1xf32>
    %9 = arith.mulf %4, %8 : vector<8x1xf32>
    %10 = arith.mulf %4, %9 : vector<8x1xf32>
    %11 = arith.subf %7, %10 : vector<8x1xf32>
    %cst_7 = arith.constant 0.0322580636 : f32
    %12 = vector.broadcast %cst_7 : f32 to vector<8x1xf32>
    %13 = arith.mulf %11, %12 : vector<8x1xf32>
    %cst_8 = arith.constant 0.000000e+00 : f32
    %14 = vector.broadcast %cst_8 : f32 to vector<8x1xf32>
    %15 = arith.maximumf %13, %14 : vector<8x1xf32>
    %16 = math.sqrt %15 : vector<8x1xf32>
    %cst_9 = arith.constant 9.99999997E-7 : f32
    %17 = vector.broadcast %cst_9 : f32 to vector<8x1xf32>
    %18 = arith.addf %16, %17 : vector<8x1xf32>
    %19 = tpu.reciprocal %18 : vector<8x1xf32> -> vector<8x1xf32>
    %20 = vector.broadcast %9 : vector<8x1xf32> to vector<8x128xf32>
    %21 = arith.subf %0, %20 : vector<8x128xf32>
    %22 = vector.broadcast %19 : vector<8x1xf32> to vector<8x128xf32>
    %23 = arith.mulf %21, %22 : vector<8x128xf32>
    %24 = vector.broadcast %1 : vector<1x128xf32> to vector<8x128xf32>
    %25 = arith.mulf %23, %24 : vector<8x128xf32>
    %26 = vector.broadcast %2 : vector<1x128xf32> to vector<8x128xf32>
    %27 = arith.addf %25, %26 : vector<8x128xf32>
    %c0_10 = arith.constant 0 : index
    %c0_11 = arith.constant 0 : index
    %28 = vector.load %arg4[%c0_10, %c0_11] : memref<8x128xf32, #tpu.memory_space<vmem>>, vector<8x128xf32>
    tpu.vector_store %arg4[%c0_10, %c0_11], %27 {strides = array<i32>} : memref<8x128xf32, #tpu.memory_space<vmem>>, vector<8x128xf32>,
    return
  }
  func.func @transform_0(%arg0: i32) -> (i32, i32) {
    %c0_i32 = arith.constant 0 : i32
    %c0_i32_0 = arith.constant 0 : i32
    return %arg0, %c0_i32 : i32, i32
  }
  func.func @transform_1(%arg0: i32) -> (i32, i32) {
    %c0_i32 = arith.constant 0 : i32
    %c0_i32_0 = arith.constant 0 : i32
    %c0_i32_1 = arith.constant 0 : i32
    return %c0_i32, %c0_i32_0 : i32, i32
  }
  func.func @transform_2(%arg0: i32) -> (i32, i32) {
    %c0_i32 = arith.constant 0 : i32
    %c0_i32_0 = arith.constant 0 : i32
    %c0_i32_1 = arith.constant 0 : i32
    return %c0_i32, %c0_i32_0 : i32, i32
  }
  func.func @transform_3(%arg0: i32) -> (i32, i32) {
    %c0_i32 = arith.constant 0 : i32
    %c0_i32_0 = arith.constant 0 : i32
    return %arg0, %c0_i32 : i32, i32
  }
}

</mosaic_0001>

<llo_original>
// kernel: tpu_custom_call.1
$region0: #{tpu_custom_call.1}
  #allocation0 [shape = 'u32[]', space=smem, size = 0x4, offset = 0x4, fixed_abs, tag = 'smem constant byte address 0x4 - core index']
  #allocation1 [shape = 'u32[72,128]{1,0:T(1,128)}', space=vmem, size = 0x9000, scoped, tag = 'internal scratch']
  %s0 = inlined_call_operand.hbm [shape: f32[16,128], index: 0, kind: input, shape index: {}]
  %s1 = inlined_call_operand.hbm [shape: f32[1,128], index: 1, kind: input, shape index: {}]
  %s2 = inlined_call_operand.vmem [shape: f32[1,128], index: 2, kind: input, shape index: {}]
  %s3 = inlined_call_operand.hbm [shape: f32[16,128], index: 3, kind: output, shape index: {}]
  %s4 = sld [smem:[#allocation0]]
  $region53: #{tpu_custom_call.1} parent=0
    _
  %s6 = ssub.s32 1, %s4
  %s7 = scalar_select 0, %s6, %s4
  $region1: #{tpu_custom_call.1} parent=0
    #allocation2 [shape = 'u8[8192]{0}', space=vmem, size = 0x2000, scoped, tag = 'input window, operand 0']
    #allocation3 [shape = 's32[2]{0}', space=sflag, size = 0x8, scoped, tag = 'scoped memory for tpu_custom_call.1']
    #allocation4 [shape = 's32[2]{0}', space=sflag, size = 0x8, scoped, tag = 'scoped memory for tpu_custom_call.1']
    #allocation5 [shape = 'u8[512]{0}', space=vmem, size = 0x400, scoped, tag = 'input window, operand 1, single buffered']
    #allocation6 [shape = 's32[1]{0}', space=sflag, size = 0x4, scoped, tag = 'scoped memory for tpu_custom_call.1']
    #allocation7 [shape = 'u8[8192]{0}', space=vmem, size = 0x2000, scoped, tag = 'output window, operand 0']
    %8 = vsyncpa [#allocation3], 0
    %s9 = scalar_lea.sflag [#allocation3], 1
    %10 = vsyncpa %s9, 0
    %11 = vsyncpa [#allocation6], 0
    %12 = vsyncpa [#allocation4], 0
    %s13 = scalar_lea.sflag [#allocation4], 1
    %14 = vsyncpa %s13, 0
    loop: start=0, step=1, limit=4
    $region2: #{tpu_custom_call.1} parent=1 // loop_pre_header
      _
    $region3: #{tpu_custom_call.1} parent=1 // loop_header
      %s16 = sphi 0, %s20
      %p17 = scmp.ge.s32.totalorder %s16, 4
      %s26 = sphi 0, %s28
      %s29 = sphi 0, %s26
      %s30 = sphi 0, %s29
      %s46 = sphi 0, %s30
      %s50 = sphi 0, %s50
      %s52 = sphi 0, %s50
      %s53 = sphi 0, %s52
      %s67 = sphi 0, %s53
      %s71 = sphi 0, %s71
      %s73 = sphi 0, %s71
      %s74 = sphi 0, %s73
      %s88 = sphi 0, %s74
      %s94 = sphi 0, %s96
      %s97 = sphi 0, %s94
      %s98 = sphi 0, %s97
      %s114 = sphi 0, %s98
    $region4: #{tpu_custom_call.1} parent=1 // loop_header_branch
      %19 = sbr.rel (%p17) target = $region8
    $region5: #{tpu_custom_call.1} parent=1 // loop_body
      %s21 = ssub.s32 %s16, 1
      %s22 = ssub.s32 %s16, 2
      %s23 = sadd.s32 %s16, 1
      %s24 = ssub.s32 %s16, %s23
      %p25 = scmp.eq.s32.totalorder %s24, 0
      %s27 = sadd.s32 %s26, 1
      %s28 = scalar_select %p25, %s26, %s27
      %p31 = pneg %p25
      %p32 = scmp.eq.s32.totalorder %s16, 1
      %p33 = por %p31, %p32
      %p34 = scmp.ne.s32.totalorder %s26, %s29
      %p35 = scmp.eq.s32.totalorder %s16, 0
      %p36 = por %p34, %p35
      %p37 = scmp.ne.s32.totalorder %s26, %s29
      %p38 = scmp.eq.s32.totalorder %s21, 1
      %p39 = por %p37, %p38
      %p40 = scmp.ne.s32.totalorder %s29, %s30
      %p41 = scmp.eq.s32.totalorder %s21, 0
      %p42 = por %p40, %p41
      %p43 = scmp.ne.s32.totalorder %s29, %s30
      %p44 = scmp.eq.s32.totalorder %s22, 1
      %p45 = por %p43, %p44
      %p47 = scmp.ne.s32.totalorder %s30, %s46
      %p48 = scmp.eq.s32.totalorder %s22, 0
      %p49 = por %p47, %p48
      %s51 = sadd.s32 %s50, 1
      %p54 = scmp.eq.s32.totalorder %s16, 1
      %p55 = scmp.ne.s32.totalorder %s50, %s52
      %p56 = scmp.eq.s32.totalorder %s16, 0
      %p57 = por %p55, %p56
      %p58 = scmp.ne.s32.totalorder %s50, %s52
      %p59 = scmp.eq.s32.totalorder %s21, 1
      %p60 = por %p58, %p59
      %p61 = scmp.ne.s32.totalorder %s52, %s53
      %p62 = scmp.eq.s32.totalorder %s21, 0
      %p63 = por %p61, %p62
      %p64 = scmp.ne.s32.totalorder %s52, %s53
      %p65 = scmp.eq.s32.totalorder %s22, 1
      %p66 = por %p64, %p65
      %p68 = scmp.ne.s32.totalorder %s53, %s67
      %p69 = scmp.eq.s32.totalorder %s22, 0
      %p70 = por %p68, %p69
      %s72 = sadd.s32 %s71, 1
      %p75 = scmp.eq.s32.totalorder %s16, 1
      %p76 = scmp.ne.s32.totalorder %s71, %s73
      %p77 = scmp.eq.s32.totalorder %s16, 0
      %p78 = por %p76, %p77
      %p79 = scmp.ne.s32.totalorder %s71, %s73
      %p80 = scmp.eq.s32.totalorder %s21, 1
      %p81 = por %p79, %p80
      %p82 = scmp.ne.s32.totalorder %s73, %s74
      %p83 = scmp.eq.s32.totalorder %s21, 0
      %p84 = por %p82, %p83
      %p85 = scmp.ne.s32.totalorder %s73, %s74
      %p86 = scmp.eq.s32.totalorder %s22, 1
      %p87 = por %p85, %p86
      %p89 = scmp.ne.s32.totalorder %s74, %s88
      %p90 = scmp.eq.s32.totalorder %s22, 0
      %p91 = por %p89, %p90
      %s92 = ssub.s32 %s16, %s23
      %p93 = scmp.eq.s32.totalorder %s92, 0
      %s95 = sadd.s32 %s94, 1
      %s96 = scalar_select %p93, %s94, %s95
      %p99 = pneg %p93
      %p100 = scmp.eq.s32.totalorder %s16, 1
      %p101 = por %p99, %p100
      %p102 = scmp.ne.s32.totalorder %s94, %s97
      %p103 = scmp.eq.s32.totalorder %s16, 0
      %p104 = por %p102, %p103
      %p105 = scmp.ne.s32.totalorder %s94, %s97
      %p106 = scmp.eq.s32.totalorder %s21, 1
      %p107 = por %p105, %p106
      %p108 = scmp.ne.s32.totalorder %s97, %s98
      %p109 = scmp.eq.s32.totalorder %s21, 0
      %p110 = por %p108, %p109
      %p111 = scmp.ne.s32.totalorder %s97, %s98
      %p112 = scmp.eq.s32.totalorder %s22, 1
      %p113 = por %p111, %p112
      %p115 = scmp.ne.s32.totalorder %s98, %s114
      %p116 = scmp.eq.s32.totalorder %s22, 0
      %p117 = por %p115, %p116
      %p118 = scmp.le.s32.totalorder 1, %s16
      %p119 = scmp.lt.s32.totalorder %s16, 3
      %p120 = pnand %p118, %p119
      %p121 = pneg %p120
      // Predicated region
      $region9: #{tpu_custom_call.1} parent=5 // pred_check
        _
      $region10: #{tpu_custom_call.1} parent=5 // pred_check_branch
        %123 = sbr.rel (%p120) target = $region12
      $region11: #{tpu_custom_call.1} parent=5 // pred_region
        %s124 = ssub.s32 %s16, 1
        // Predicated region
        $region13: #{tpu_custom_call.1} parent=11 // pred_check
          %p125 = pneg %p63
        $region14: #{tpu_custom_call.1} parent=11 // pred_check_branch
          %127 = sbr.rel (%p125) target = $region16
        $region15: #{tpu_custom_call.1} parent=11 // pred_region
          %129 = vsyncadd [#allocation6], 0
          %s131 = sshll.u32 %s1, 4
          %s132 = int_to_ptr.hbm [resolvable:$true] %s131
          %s133 = sshll.u32 [#allocation5], 4
          %s134 = int_to_ptr.vmem [resolvable:$true] %s133
          %136 = dma.hbm_to_vmem [thread:$0]  %s132, 16, %s134, [#allocation6]
        $region16: #{tpu_custom_call.1} parent=11 // pred_fallthru
          _
        // Predicated region
        $region17: #{tpu_custom_call.1} parent=11 // pred_check
          %p137 = pneg %p84
        $region18: #{tpu_custom_call.1} parent=11 // pred_check_branch
          %139 = sbr.rel (%p137) target = $region20
        $region19: #{tpu_custom_call.1} parent=11 // pred_region
          _
        $region20: #{tpu_custom_call.1} parent=11 // pred_fallthru
          _
      $region12: #{tpu_custom_call.1} parent=5 // pred_fallthru
        _
      %p140 = scmp.lt.s32.totalorder %s16, 2
      // Predicated region
      $region21: #{tpu_custom_call.1} parent=5 // pred_check
        %p141 = pneg %p140
      $region22: #{tpu_custom_call.1} parent=5 // pred_check_branch
        %143 = sbr.rel (%p141) target = $region24
      $region23: #{tpu_custom_call.1} parent=5 // pred_region
        // Predicated region
        $region25: #{tpu_custom_call.1} parent=23 // pred_check
          %p144 = pneg %p36
        $region26: #{tpu_custom_call.1} parent=23 // pred_check_branch
          %146 = sbr.rel (%p144) target = $region28
        $region27: #{tpu_custom_call.1} parent=23 // pred_region
          %s147 = sand.u32 %s26, 1
          %s148 = scalar_lea.sflag [#allocation3], %s147
          %s149 = sand.u32 %s26, 1
          %s150 = smul.addr %s149, 8
          %s151 = scalar_lea.vmem [#allocation2], %s150
          %153 = vsyncadd %s148, 0
          %s154 = smul.addr %s16, 8
          %s155 = scalar_lea.hbm %s0, %s154
          %s157 = sshll.u32 %s155, 4
          %s158 = int_to_ptr.hbm [resolvable:$true] %s157
          %s159 = sshll.u32 %s151, 4
          %s160 = int_to_ptr.vmem [resolvable:$true] %s159
          %162 = dma.hbm_to_vmem [thread:$0]  %s158, 128, %s160, %s148
        $region28: #{tpu_custom_call.1} parent=23 // pred_fallthru
          _
      $region24: #{tpu_custom_call.1} parent=5 // pred_fallthru
        _
      %p163 = scmp.le.s32.totalorder 1, %s16
      %p164 = scmp.lt.s32.totalorder %s16, 3
      %p165 = pnand %p163, %p164
      %p166 = pneg %p165
      // Predicated region
      $region29: #{tpu_custom_call.1} parent=5 // pred_check
        _
      $region30: #{tpu_custom_call.1} parent=5 // pred_check_branch
        %168 = sbr.rel (%p165) target = $region32
      $region31: #{tpu_custom_call.1} parent=5 // pred_region
        %s169 = ssub.s32 %s16, 1
        %s170 = sand.u32 %s29, 1
        %s171 = scalar_lea.sflag [#allocation3], %s170
        %s172 = sand.u32 %s29, 1
        %s173 = smul.addr %s172, 8
        %s174 = scalar_lea.vmem [#allocation2], %s173
        // Predicated region
        $region33: #{tpu_custom_call.1} parent=31 // pred_check
          %p175 = pneg %p42
        $region34: #{tpu_custom_call.1} parent=31 // pred_check_branch
          %177 = sbr.rel (%p175) target = $region36
        $region35: #{tpu_custom_call.1} parent=31 // pred_region
          %179 = dma.done %s171, 128
        $region36: #{tpu_custom_call.1} parent=31 // pred_fallthru
          _
        // Predicated region
        $region37: #{tpu_custom_call.1} parent=31 // pred_check
          %p180 = pneg %p63
        $region38: #{tpu_custom_call.1} parent=31 // pred_check_branch
          %182 = sbr.rel (%p180) target = $region40
        $region39: #{tpu_custom_call.1} parent=31 // pred_region
          %184 = dma.done [#allocation6], 16
        $region40: #{tpu_custom_call.1} parent=31 // pred_fallthru
          _
        %s185 = sand.u32 %s29, 1
        %s186 = scalar_lea.sflag [#allocation3], %s185
        %s187 = sand.u32 %s29, 1
        %s188 = smul.addr %s187, 8
        %s189 = scalar_lea.vmem [#allocation2], %s188
        %p190 = pneg %p42
        %p191 = pneg %p39
        %p192 = pneg %p63
        %p193 = pneg %p60
        %p194 = pneg %p84
        %p195 = pneg %p81
        %p196 = pneg %p110
        %p197 = pneg %p107
        %s198 = sand.u32 %s97, 1
        %s199 = scalar_lea.sflag [#allocation4], %s198
        %s200 = sand.u32 %s97, 1
        %s201 = smul.addr %s200, 8
        %s202 = scalar_lea.vmem [#allocation7], %s201
        %v203 = vld [vmem:[%s174] sm:$0xff]
        %v204 = vld [vmem:[#allocation5] sm:$0x1]
        %v205 = vld [vmem:[%s2] sm:$0x1]
        %206 = vadd.xlane.f32.xlu0 %v203
        %v207 = vpop.xlane.xlu0 %206
        %v208 = vmul.f32 %v203, %v203
        %209 = vadd.xlane.f32.xlu0 %v208
        %v210 = vpop.xlane.xlu0 %209
        %v211 = vmul.f32 %v207, 0.03125
        %v212 = vmul.f32 %v207, %v211
        %v213 = vsub.f32 %v210, %v212
        %v214 = vmul.f32 %v213, 0.032258064
        %v215 = vmax.f32 %v214, 0.0
        %v216 = vrsqrt.pop %v215
        %v217 = vmul.f32 %v216, %v215
        %v218 = vmul.f32 %v217, %v216
        %v219 = vmul.f32 0.5, %v218
        %v220 = vsub.f32 1.5, %v219
        %v221 = vmul.f32 %v216, %v220
        %v222 = vmul.f32 %v215, %v221
        %vm223 = vcmp.eq.f32.partialorder %v215, inf
        %v224 = vsel %vm223, %v215, %v222
        %vm225 = vcmp.eq.f32.partialorder %v215, 0.0
        %v226 = vand.u32 %v215, 2147483648
        %v227 = vsel %vm225, %v226, %v224
        %v228 = vadd.f32 %v227, 1e-06
        %v229 = vrcp.pop %v228
        %v230 = vmul.f32 %v228, %v229
        %v231 = vsub.f32 1.0, %v230
        %v232 = vmul.f32 %v229, %v231
        %v233 = vadd.f32 %v229, %v232
        %vm234 = vweird.f32 %v228
        %vm235 = vweird.f32 %v229
        %vm236 = vmor %vm234, %vm235
        %v237 = vsel %vm236, %v229, %v233
        %v238 = vand.u32 2147483647, %v228
        %vm239 = vcmp.eq.f32.partialorder %v238, 8.507059e+37
        %v240 = vand.u32 %v228, 2147483648
        %v241 = vor.u32 1.1754944e-38, %v240
        %v242 = vsel %vm239, %v241, %v237
        %v243 = vsub.f32 %v203, %v211
        %v244 = vmul.f32 %v243, %v242
        %v246 = vperm.slane %v204, 0
        %v248 = vmul.f32 %v244, %v246
        %v250 = vperm.slane %v205, 0
        %v252 = vadd.f32 %v248, %v250
        %253 = vst [vmem:[%s202] sm:$0xff] %v252
        %s254 = sand.u32 %s97, 1
        %s255 = scalar_lea.sflag [#allocation4], %s254
        %s256 = sand.u32 %s97, 1
        %s257 = smul.addr %s256, 8
        %s258 = scalar_lea.vmem [#allocation7], %s257
        // Predicated region
        $region41: #{tpu_custom_call.1} parent=31 // pred_check
          %p259 = pneg %p107
        $region42: #{tpu_custom_call.1} parent=31 // pred_check_branch
          %261 = sbr.rel (%p259) target = $region44
        $region43: #{tpu_custom_call.1} parent=31 // pred_region
          %263 = vsyncadd %s255, 0
          %s264 = smul.addr %s21, 8
          %s265 = scalar_lea.hbm %s3, %s264
          %s267 = sshll.u32 %s258, 4
          %s268 = int_to_ptr.vmem [resolvable:$true] %s267
          %s269 = sshll.u32 %s265, 4
          %s270 = int_to_ptr.hbm [resolvable:$true] %s269
          %272 = dma.vmem_to_hbm [thread:$0]  %s268, 128, %s270, %s255
        $region44: #{tpu_custom_call.1} parent=31 // pred_fallthru
          _
      $region32: #{tpu_custom_call.1} parent=5 // pred_fallthru
        _
      %p273 = scmp.le.s32.totalorder 2, %s16
      // Predicated region
      $region45: #{tpu_custom_call.1} parent=5 // pred_check
        %p274 = pneg %p273
      $region46: #{tpu_custom_call.1} parent=5 // pred_check_branch
        %276 = sbr.rel (%p274) target = $region48
      $region47: #{tpu_custom_call.1} parent=5 // pred_region
        %s277 = ssub.s32 %s16, 2
        // Predicated region
        $region49: #{tpu_custom_call.1} parent=47 // pred_check
          %p278 = pneg %p113
        $region50: #{tpu_custom_call.1} parent=47 // pred_check_branch
          %280 = sbr.rel (%p278) target = $region52
        $region51: #{tpu_custom_call.1} parent=47 // pred_region
          %s281 = sand.u32 %s98, 1
          %s282 = scalar_lea.sflag [#allocation4], %s281
          %s283 = sand.u32 %s98, 1
          %s284 = smul.addr %s283, 8
          %s285 = scalar_lea.vmem [#allocation7], %s284
          %287 = dma.done %s282, 128
        $region52: #{tpu_custom_call.1} parent=47 // pred_fallthru
          _
      $region48: #{tpu_custom_call.1} parent=5 // pred_fallthru
        _
    $region6: #{tpu_custom_call.1} parent=1 // loop_footer
      %s20 = sadd.s32 1, %s16
    $region7: #{tpu_custom_call.1} parent=1 // loop_footer_branch
      %15 = sbr.rel target = $region3
    $region8: #{tpu_custom_call.1} parent=1 // loop_exit
      _
    %288 = vsyncpa [#allocation3], 1
    %s289 = scalar_lea.sflag [#allocation3], 1
    %290 = vsyncpa %s289, 1
    %291 = vsyncpa [#allocation6], 1
    %292 = vsyncpa [#allocation4], 1
    %s293 = scalar_lea.sflag [#allocation4], 1
    %294 = vsyncpa %s293, 1

</llo_original>
